<compile_context>
chip_gen: v7x
topology: tpu7x:2x2x1
jax: 0.10.0
libtpu: 0.0.40
codegen_flags: <defaults>
</compile_context>

<pallas_src>
import functools

import jax
import jax.numpy as jnp
from jax.experimental import pallas as pl
from jax.experimental.pallas import tpu as pltpu


# ----------------------------------------------------------------------------
# Kernel
# ----------------------------------------------------------------------------
def _actor_mlp_kernel(x_ref,
                      w1_ref, w2_ref, w3_ref, w4_ref,
                      b_ref,
                      o_ref,
                      *, mid_p):
    """Fused MLP: Linear->ReLU->Linear->ReLU->Linear->Hardswish->Linear.

    bf16 operands into the MXU, f32 accumulation + f32 elementwise math.
    All weight/bias lane dims are padded to multiples of 128 (zero padding),
    so every matmul and the output store are full-lane / unmasked.
    """
    x = x_ref[...]                                  # already bf16 from wrapper

    # Static, lane-aligned slices of the concatenated bias row (f32).
    b1 = b_ref[:, 0 * mid_p:1 * mid_p]
    b2 = b_ref[:, 1 * mid_p:2 * mid_p]
    b3 = b_ref[:, 2 * mid_p:3 * mid_p]
    b4 = b_ref[:, 3 * mid_p:]

    # Layer 1: Linear + ReLU
    h = jnp.dot(x, w1_ref[...], preferred_element_type=jnp.float32) + b1
    h = jnp.maximum(h, 0.0)

    # Layer 2: Linear + ReLU
    h = jnp.dot(h.astype(jnp.bfloat16), w2_ref[...],
                preferred_element_type=jnp.float32) + b2
    h = jnp.maximum(h, 0.0)

    # Layer 3: Linear + Hardswish  (z * relu6(z + 3) / 6), f32 on the VPU.
    z = jnp.dot(h.astype(jnp.bfloat16), w3_ref[...],
                preferred_element_type=jnp.float32) + b3
    h = z * jnp.clip(z + 3.0, 0.0, 6.0) * (1.0 / 6.0)

    # Layer 4: Linear (mid -> action_dim, lane-padded): logits.
    o = jnp.dot(h.astype(jnp.bfloat16), w4_ref[...],
                preferred_element_type=jnp.float32) + b4
    o_ref[...] = o.astype(o_ref.dtype)


# ----------------------------------------------------------------------------
# Helpers
# ----------------------------------------------------------------------------
def _round_up(x, m):
    return ((x + m - 1) // m) * m


def _tensorcores_per_chip():
    """2 on v7x (megacore sharding pays off), 1 on v5e/v6e. Never raises."""
    try:
        kind = jax.devices()[0].device_kind.lower()
    except Exception:
        return 1
    if "v7" in kind or "tpu7" in kind:
        return 2
    return 1


def _choose_batch_tile(batch, batch_tile, multi_core):
    """MXU-M-aligned batch tile; split in two only where megacore exists."""
    batch_tile = max(128, _round_up(batch_tile, 128))
    if multi_core and batch >= 256:
        # Two (or more) grid steps so the "parallel" axis shards across the
        # two v7x TensorCores; each step a multiple of 128/256 rows.
        align = 256 if batch >= 512 else 128
        return min(batch_tile, _round_up(pl.cdiv(batch, 2), align))
    # Single TensorCore (v5e/v6e): extra grid steps are pure per-step overhead.
    return min(batch_tile, _round_up(batch, 128))


# ----------------------------------------------------------------------------
# Parameters
# ----------------------------------------------------------------------------
def init_actor_params(key, mid_dim, state_dim, action_dim):
    """Unpadded f32 parameters mirroring PyTorch nn.Linear defaults.

    Weights stored (in, out) == transpose of PyTorch's (out, in); biases (1, out).
    Init U(-1/sqrt(fan_in), 1/sqrt(fan_in)).
    """
    keys = jax.random.split(key, 8)

    def linear(kw, kb, fan_in, fan_out):
        bound = 1.0 / (float(fan_in) ** 0.5)
        w = jax.random.uniform(kw, (fan_in, fan_out), jnp.float32, -bound, bound)
        b = jax.random.uniform(kb, (1, fan_out), jnp.float32, -bound, bound)
        return w, b

    w1, b1 = linear(keys[0], keys[1], state_dim, mid_dim)
    w2, b2 = linear(keys[2], keys[3], mid_dim, mid_dim)
    w3, b3 = linear(keys[4], keys[5], mid_dim, mid_dim)
    w4, b4 = linear(keys[6], keys[7], mid_dim, action_dim)
    return (w1, b1, w2, b2, w3, b3, w4, b4)


def pack_actor_params(params, lane=128):
    """One-time repack: zero-pad mid/action dims to 128 lanes, cast weights to
    bf16 (MXU fast path), concatenate the four bias rows into one f32 row."""
    w1, b1, w2, b2, w3, b3, w4, b4 = params
    state_dim, mid_dim = w1.shape
    action_dim = w4.shape[1]
    mid_p = _round_up(mid_dim, lane)
    act_p = _round_up(action_dim, lane)

    def pad2(a, rows, cols):
        return jnp.pad(a, ((0, rows - a.shape[0]), (0, cols - a.shape[1])))

    packed = {
        "w1": pad2(w1, state_dim, mid_p).astype(jnp.bfloat16),
        "w2": pad2(w2, mid_p, mid_p).astype(jnp.bfloat16),
        "w3": pad2(w3, mid_p, mid_p).astype(jnp.bfloat16),
        "w4": pad2(w4, mid_p, act_p).astype(jnp.bfloat16),
        "b": jnp.concatenate(
            [pad2(b1, 1, mid_p), pad2(b2, 1, mid_p),
             pad2(b3, 1, mid_p), pad2(b4, 1, act_p)], axis=1
        ).astype(jnp.float32),
        "state_dim": state_dim,
        "mid_dim": mid_dim,
        "action_dim": action_dim,
        "mid_p": mid_p,
        "act_p": act_p,
    }
    return packed


# ----------------------------------------------------------------------------
# Forward
# ----------------------------------------------------------------------------
def _reference_forward(state, packed):
    """Pure-JAX reference with identical bf16-operand / f32-accumulate math."""
    w1, w2, w3, w4, b = (packed["w1"], packed["w2"], packed["w3"],
                         packed["w4"], packed["b"])
    mid_p = packed["mid_p"]
    b1 = b[:, 0 * mid_p:1 * mid_p]
    b2 = b[:, 1 * mid_p:2 * mid_p]
    b3 = b[:, 2 * mid_p:3 * mid_p]
    b4 = b[:, 3 * mid_p:]

    def dot(a, w):
        return jnp.dot(a.astype(jnp.bfloat16), w,
                       preferred_element_type=jnp.float32)

    h = jnp.maximum(dot(state, w1) + b1, 0.0)
    h = jnp.maximum(dot(h, w2) + b2, 0.0)
    z = dot(h, w3) + b3
    h = z * jnp.clip(z + 3.0, 0.0, 6.0) * (1.0 / 6.0)
    o = dot(h, w4) + b4
    return o[:, :packed["action_dim"]]


def actor_discrete_ppo_forward(state, packed, *, batch_tile=256,
                               force_pallas=False):
    """ActorDiscretePPO.forward: state (B, state_dim) -> logits (B, action_dim)."""
    B, state_dim = state.shape
    assert state_dim == packed["state_dim"]
    action_dim = packed["action_dim"]
    mid_p = packed["mid_p"]
    act_p = packed["act_p"]
    w1, w2, w3, w4, b = (packed["w1"], packed["w2"], packed["w3"],
                         packed["w4"], packed["b"])

    # Single-env-step sized batches: pallas_call launch + pipeline setup
    # dominates; XLA's fused dot chain is faster and avoids masked stores.
    if B <= 8 and not force_pallas:
        return _reference_forward(state, packed)

    # bf16 input end-to-end: halves the input DMA and removes the in-kernel cast.
    x = state.astype(jnp.bfloat16)

    multi_core = _tensorcores_per_chip() >= 2
    tb = _choose_batch_tile(B, batch_tile, multi_core)
    grid = (pl.cdiv(B, tb),)          # partial last tile: masked write, benign

    # Advisory cost model for the XLA scheduler around this custom call.
    flops = 2 * B * (state_dim * mid_p + 2 * mid_p * mid_p + mid_p * act_p)
    weight_bytes = 2 * (w1.size + w2.size + w3.size + w4.size)   # bf16
    bias_bytes = 4 * b.size                                      # f32
    bytes_accessed = (2 * B * state_dim + weight_bytes + bias_bytes
                      + 4 * B * act_p)
    cost = pl.CostEstimate(flops=int(flops), transcendentals=0,
                           bytes_accessed=int(bytes_accessed))

    # Scoped-VMEM limit from the real footprint (double-buffered tiles,
    # grid-invariant weights, a few f32 activation intermediates) + headroom.
    footprint = (2 * (weight_bytes + bias_bytes)                 # weight/bias bufs
                 + 2 * (2 * tb * state_dim)                      # bf16 input tile
                 + 2 * (4 * tb * act_p)                          # f32 output tile
                 + 4 * (4 * tb * mid_p))                         # f32 activations
    cap = (56 if multi_core else 100) * 1024 * 1024              # v7x has 64 MiB VMEM
    vmem_limit = int(min(max(2 * footprint, 32 * 1024 * 1024), cap))

    full = lambda shape: pl.BlockSpec(shape, lambda i: (0, 0))   # grid-invariant

    out = pl.pallas_call(
        functools.partial(_actor_mlp_kernel, mid_p=mid_p),
        out_shape=jax.ShapeDtypeStruct((B, act_p), jnp.float32),
        grid=grid,
        in_specs=[
            pl.BlockSpec((tb, state_dim), lambda i: (i, 0)),     # state tile
            full((state_dim, mid_p)),                            # w1
            full((mid_p, mid_p)),                                # w2
            full((mid_p, mid_p)),                                # w3
            full((mid_p, act_p)),                                # w4
            full((1, 3 * mid_p + act_p)),                        # biases (fused)
        ],
        out_specs=pl.BlockSpec((tb, act_p), lambda i: (i, 0)),   # lane-dense store
        compiler_params=pltpu.CompilerParams(
            dimension_semantics=("parallel",),
            vmem_limit_bytes=vmem_limit),
        cost_estimate=cost,
    )(x, w1, w2, w3, w4, b)

    return out[:, :action_dim]


# ----------------------------------------------------------------------------
# Self-test
# ----------------------------------------------------------------------------
if __name__ == "__main__":
    key = jax.random.PRNGKey(0)
    k_params, k_s1, k_s2 = jax.random.split(key, 3)

    state_dim, mid_dim, action_dim = 16, 32, 4
    raw_params = init_actor_params(k_params, mid_dim, state_dim, action_dim)
    packed = pack_actor_params(raw_params)

    # 1) Tiny batch, forced through the Pallas kernel (single partial tile).
    s_small = jax.random.normal(k_s1, (2, state_dim), dtype=jnp.float32)
    logits_small = jax.block_until_ready(
        actor_discrete_ppo_forward(s_small, packed, force_pallas=True))
    ref_small = _reference_forward(s_small, packed)
    assert logits_small.shape == (2, action_dim), logits_small.shape
    assert bool(jnp.allclose(logits_small, ref_small, atol=2e-3, rtol=2e-3))

    # 2) Rollout-sized batch: multi-step grid (on v7x) / partial last tile.
    s_big = jax.random.normal(k_s2, (300, state_dim), dtype=jnp.float32)
    logits_big = jax.block_until_ready(actor_discrete_ppo_forward(s_big, packed))
    ref_big = _reference_forward(s_big, packed)
    assert logits_big.shape == (300, action_dim), logits_big.shape
    assert bool(jnp.allclose(logits_big, ref_big, atol=2e-3, rtol=2e-3))

    # 3) Tiny-batch fast path (B <= 8 skips pallas_call entirely).
    logits_fb = jax.block_until_ready(actor_discrete_ppo_forward(s_small, packed))
    assert bool(jnp.allclose(logits_fb, ref_small, atol=2e-3, rtol=2e-3))

    print("KERNEL_OK")
</pallas_src>

<mosaic_0001>
module attributes {stable_mosaic.version = 11 : i64} {
  func.func @_actor_mlp_kernel(%arg0: i32, %arg1: memref<128x16xbf16, #tpu.memory_space<vmem>>, %arg2: memref<16x128xbf16, #tpu.memory_space<vmem>>, %arg3: memref<128x128xbf16, #tpu.memory_space<vmem>>, %arg4: memref<128x128xbf16, #tpu.memory_space<vmem>>, %arg5: memref<128x128xbf16, #tpu.memory_space<vmem>>, %arg6: memref<1x512xf32, #tpu.memory_space<vmem>>, %arg7: memref<128x128xf32, #tpu.memory_space<vmem>>) attributes {dimension_semantics = [#tpu.dimension_semantics<parallel>], iteration_bounds = array<i64: 1>, scalar_prefetch = 0 : i64, scratch_operands = 0 : i64, tpu.core_type = #tpu.core_type<tc>, window_params = [{transform_indices = @transform_0, window_bounds = array<i64: 128, 16>}, {pipeline_mode = #tpu.pipeline_mode<synchronous>, transform_indices = @transform_1, window_bounds = array<i64: 16, 128>}, {pipeline_mode = #tpu.pipeline_mode<synchronous>, transform_indices = @transform_2, window_bounds = array<i64: 128, 128>}, {pipeline_mode = #tpu.pipeline_mode<synchronous>, transform_indices = @transform_3, window_bounds = array<i64: 128, 128>}, {pipeline_mode = #tpu.pipeline_mode<synchronous>, transform_indices = @transform_4, window_bounds = array<i64: 128, 128>}, {pipeline_mode = #tpu.pipeline_mode<synchronous>, transform_indices = @transform_5, window_bounds = array<i64: 1, 512>}, {transform_indices = @transform_6, window_bounds = array<i64: 128, 128>}]} {
    %c0 = arith.constant 0 : index
    %c0_0 = arith.constant 0 : index
    %0 = vector.load %arg1[%c0, %c0_0] : memref<128x16xbf16, #tpu.memory_space<vmem>>, vector<128x16xbf16>
    %c0_1 = arith.constant 0 : index
    %c0_2 = arith.constant 0 : index
    %1 = vector.load %arg6[%c0_1, %c0_2] : memref<1x512xf32, #tpu.memory_space<vmem>>, vector<1x128xf32>
    %c0_3 = arith.constant 0 : index
    %c128 = arith.constant 128 : index
    %2 = vector.load %arg6[%c0_3, %c128] : memref<1x512xf32, #tpu.memory_space<vmem>>, vector<1x128xf32>
    %c0_4 = arith.constant 0 : index
    %c256 = arith.constant 256 : index
    %3 = vector.load %arg6[%c0_4, %c256] : memref<1x512xf32, #tpu.memory_space<vmem>>, vector<1x128xf32>
    %c0_5 = arith.constant 0 : index
    %c384 = arith.constant 384 : index
    %4 = vector.load %arg6[%c0_5, %c384] : memref<1x512xf32, #tpu.memory_space<vmem>>, vector<1x128xf32>
    %c0_6 = arith.constant 0 : index
    %c0_7 = arith.constant 0 : index
    %5 = vector.load %arg2[%c0_6, %c0_7] : memref<16x128xbf16, #tpu.memory_space<vmem>>, vector<16x128xbf16>
    %cst = arith.constant dense<0.000000e+00> : vector<128x128xf32>
    %6 = tpu.matmul %0, %5, %cst {dimension_numbers = #tpu.dot_dimension_numbers<[1], [0], [0], [1], [0, 0, 1, 1], [], []>} : vector<128x16xbf16>, vector<16x128xbf16>, vector<128x128xf32> -> vector<128x128xf32>
    %7 = vector.broadcast %1 : vector<1x128xf32> to vector<128x128xf32>
    %8 = arith.addf %6, %7 : vector<128x128xf32>
    %cst_8 = arith.constant 0.000000e+00 : f32
    %9 = vector.broadcast %cst_8 : f32 to vector<128x128xf32>
    %10 = arith.maximumf %8, %9 : vector<128x128xf32>
    %11 = arith.truncf %10 : vector<128x128xf32> to vector<128x128xbf16>
    %c0_9 = arith.constant 0 : index
    %c0_10 = arith.constant 0 : index
    %12 = vector.load %arg3[%c0_9, %c0_10] : memref<128x128xbf16, #tpu.memory_space<vmem>>, vector<128x128xbf16>
    %cst_11 = arith.constant dense<0.000000e+00> : vector<128x128xf32>
    %13 = tpu.matmul %11, %12, %cst_11 {dimension_numbers = #tpu.dot_dimension_numbers<[1], [0], [0], [1], [0, 0, 1, 1], [], []>} : vector<128x128xbf16>, vector<128x128xbf16>, vector<128x128xf32> -> vector<128x128xf32>
    %14 = vector.broadcast %2 : vector<1x128xf32> to vector<128x128xf32>
    %15 = arith.addf %13, %14 : vector<128x128xf32>
    %cst_12 = arith.constant 0.000000e+00 : f32
    %16 = vector.broadcast %cst_12 : f32 to vector<128x128xf32>
    %17 = arith.maximumf %15, %16 : vector<128x128xf32>
    %18 = arith.truncf %17 : vector<128x128xf32> to vector<128x128xbf16>
    %c0_13 = arith.constant 0 : index
    %c0_14 = arith.constant 0 : index
    %19 = vector.load %arg4[%c0_13, %c0_14] : memref<128x128xbf16, #tpu.memory_space<vmem>>, vector<128x128xbf16>
    %cst_15 = arith.constant dense<0.000000e+00> : vector<128x128xf32>
    %20 = tpu.matmul %18, %19, %cst_15 {dimension_numbers = #tpu.dot_dimension_numbers<[1], [0], [0], [1], [0, 0, 1, 1], [], []>} : vector<128x128xbf16>, vector<128x128xbf16>, vector<128x128xf32> -> vector<128x128xf32>
    %21 = vector.broadcast %3 : vector<1x128xf32> to vector<128x128xf32>
    %22 = arith.addf %20, %21 : vector<128x128xf32>
    %cst_16 = arith.constant 3.000000e+00 : f32
    %23 = vector.broadcast %cst_16 : f32 to vector<128x128xf32>
    %24 = arith.addf %22, %23 : vector<128x128xf32>
    %cst_17 = arith.constant 0.000000e+00 : f32
    %cst_18 = arith.constant 6.000000e+00 : f32
    %25 = vector.broadcast %cst_17 : f32 to vector<128x128xf32>
    %26 = arith.maximumf %25, %24 : vector<128x128xf32>
    %27 = vector.broadcast %cst_18 : f32 to vector<128x128xf32>
    %28 = arith.minimumf %27, %26 : vector<128x128xf32>
    %29 = arith.mulf %22, %28 : vector<128x128xf32>
    %cst_19 = arith.constant 0.166666672 : f32
    %30 = vector.broadcast %cst_19 : f32 to vector<128x128xf32>
    %31 = arith.mulf %29, %30 : vector<128x128xf32>
    %32 = arith.truncf %31 : vector<128x128xf32> to vector<128x128xbf16>
    %c0_20 = arith.constant 0 : index
    %c0_21 = arith.constant 0 : index
    %33 = vector.load %arg5[%c0_20, %c0_21] : memref<128x128xbf16, #tpu.memory_space<vmem>>, vector<128x128xbf16>
    %cst_22 = arith.constant dense<0.000000e+00> : vector<128x128xf32>
    %34 = tpu.matmul %32, %33, %cst_22 {dimension_numbers = #tpu.dot_dimension_numbers<[1], [0], [0], [1], [0, 0, 1, 1], [], []>} : vector<128x128xbf16>, vector<128x128xbf16>, vector<128x128xf32> -> vector<128x128xf32>
    %35 = vector.broadcast %4 : vector<1x128xf32> to vector<128x128xf32>
    %36 = arith.addf %34, %35 : vector<128x128xf32>
    %c0_23 = arith.constant 0 : index
    %c0_24 = arith.constant 0 : index
    %37 = vector.load %arg7[%c0_23, %c0_24] : memref<128x128xf32, #tpu.memory_space<vmem>>, vector<128x128xf32>
    tpu.vector_store %arg7[%c0_23, %c0_24], %36 {strides = array<i32>} : memref<128x128xf32, #tpu.memory_space<vmem>>, vector<128x128xf32>,
    return
  }
  func.func @transform_0(%arg0: i32) -> (i32, i32) {
    %c0_i32 = arith.constant 0 : i32
    %c0_i32_0 = arith.constant 0 : i32
    return %arg0, %c0_i32 : i32, i32
  }
  func.func @transform_1(%arg0: i32) -> (i32, i32) {
    %c0_i32 = arith.constant 0 : i32
    %c0_i32_0 = arith.constant 0 : i32
    %c0_i32_1 = arith.constant 0 : i32
    return %c0_i32, %c0_i32_0 : i32, i32
  }
  func.func @transform_2(%arg0: i32) -> (i32, i32) {
    %c0_i32 = arith.constant 0 : i32
    %c0_i32_0 = arith.constant 0 : i32
    %c0_i32_1 = arith.constant 0 : i32
    return %c0_i32, %c0_i32_0 : i32, i32
  }
  func.func @transform_3(%arg0: i32) -> (i32, i32) {
    %c0_i32 = arith.constant 0 : i32
    %c0_i32_0 = arith.constant 0 : i32
    %c0_i32_1 = arith.constant 0 : i32
    return %c0_i32, %c0_i32_0 : i32, i32
  }
  func.func @transform_4(%arg0: i32) -> (i32, i32) {
    %c0_i32 = arith.constant 0 : i32
    %c0_i32_0 = arith.constant 0 : i32
    %c0_i32_1 = arith.constant 0 : i32
    return %c0_i32, %c0_i32_0 : i32, i32
  }
  func.func @transform_5(%arg0: i32) -> (i32, i32) {
    %c0_i32 = arith.constant 0 : i32
    %c0_i32_0 = arith.constant 0 : i32
    %c0_i32_1 = arith.constant 0 : i32
    return %c0_i32, %c0_i32_0 : i32, i32
  }
  func.func @transform_6(%arg0: i32) -> (i32, i32) {
    %c0_i32 = arith.constant 0 : i32
    %c0_i32_0 = arith.constant 0 : i32
    return %arg0, %c0_i32 : i32, i32
  }
}

</mosaic_0001>

<llo_original>
// kernel: tpu_custom_call.1
$region0: #{tpu_custom_call.1}
  #allocation0 [shape = 'u32[]', space=smem, size = 0x4, offset = 0x4, fixed_abs, tag = 'smem constant byte address 0x4 - core index']
  #allocation1 [shape = 'u32[144,128]{1,0:T(1,128)}', space=vmem, size = 0x12000, scoped, tag = 'internal scratch']
  %s0 = inlined_call_operand.hbm [shape: bf16[2,16], index: 0, kind: input, shape index: {}]
  %s1 = inlined_call_operand.hbm [shape: bf16[16,128], index: 1, kind: input, shape index: {}]
  %s2 = inlined_call_operand.hbm [shape: bf16[128,128], index: 2, kind: input, shape index: {}]
  %s3 = inlined_call_operand.hbm [shape: bf16[128,128], index: 3, kind: input, shape index: {}]
  %s4 = inlined_call_operand.hbm [shape: bf16[128,128], index: 4, kind: input, shape index: {}]
  %s5 = inlined_call_operand.vmem [shape: f32[1,512], index: 5, kind: input, shape index: {}]
  %s6 = inlined_call_operand.hbm [shape: f32[2,128], index: 6, kind: output, shape index: {}]
  %s7 = sld [smem:[#allocation0]]
  $region54: #{tpu_custom_call.1} parent=0
    _
  %s9 = ssub.s32 1, %s7
  %s10 = scalar_select 0, %s9, %s7
  $region1: #{tpu_custom_call.1} parent=0
    #allocation2 [shape = 'u8[32768]{0}', space=vmem, size = 0x8000, scoped, tag = 'input window, operand 0, single buffered']
    #allocation3 [shape = 's32[1]{0}', space=sflag, size = 0x4, scoped, tag = 'scoped memory for tpu_custom_call.1']
    #allocation4 [shape = 's32[1]{0}', space=sflag, size = 0x4, scoped, tag = 'scoped memory for tpu_custom_call.1']
    #allocation5 [shape = 'u8[4096]{0}', space=vmem, size = 0x1000, scoped, tag = 'input window, operand 1, single buffered']
    #allocation6 [shape = 's32[1]{0}', space=sflag, size = 0x4, scoped, tag = 'scoped memory for tpu_custom_call.1']
    #allocation7 [shape = 'u8[32768]{0}', space=vmem, size = 0x8000, scoped, tag = 'input window, operand 2, single buffered']
    #allocation8 [shape = 'u8[32768]{0}', space=vmem, size = 0x8000, scoped, tag = 'input window, operand 3, single buffered']
    #allocation9 [shape = 's32[1]{0}', space=sflag, size = 0x4, scoped, tag = 'scoped memory for tpu_custom_call.1']
    #allocation10 [shape = 'u8[32768]{0}', space=vmem, size = 0x8000, scoped, tag = 'input window, operand 4, single buffered']
    #allocation11 [shape = 'u8[65536]{0}', space=vmem, size = 0x10000, scoped, tag = 'output window, operand 0, single buffered']
    %11 = vsyncpa [#allocation3], 0
    %12 = vsyncpa [#allocation6], 0
    %13 = vsyncpa [#allocation9], 0
    %14 = vsyncpa [#allocation4], 0
    // Predicated region
    $region2: #{tpu_custom_call.1} parent=1 // pred_check
      _
    $region3: #{tpu_custom_call.1} parent=1 // pred_check_branch
      %16 = sbr.rel (0) target = $region5
    $region4: #{tpu_custom_call.1} parent=1 // pred_region
      %s18 = ssub.s32 1024, 16
      %19 = vsyncadd [#allocation3], %s18
      %s20 = sshll.u32 [#allocation2], 4
      %s21 = int_to_ptr.vmem [resolvable:$true] %s20
      %26 = dma.hbm_to_vmem [thread:$0]  %s0, 16, %s21, [#allocation3], 16, 16, 1
    $region5: #{tpu_custom_call.1} parent=1 // pred_fallthru
      _
    // Predicated region
    $region6: #{tpu_custom_call.1} parent=1 // pred_check
      _
    $region7: #{tpu_custom_call.1} parent=1 // pred_check_branch
      %28 = sbr.rel (0) target = $region9
    $region8: #{tpu_custom_call.1} parent=1 // pred_region
      %s30 = ssub.s32 128, 128
      %31 = vsyncadd [#allocation6], %s30
      %s32 = sshll.u32 [#allocation5], 4
      %s33 = int_to_ptr.vmem [resolvable:$true] %s32
      %38 = dma.hbm_to_vmem [thread:$0]  %s1, 128, %s33, [#allocation6], 64, 64, 4
    $region9: #{tpu_custom_call.1} parent=1 // pred_fallthru
      _
    // Predicated region
    $region10: #{tpu_custom_call.1} parent=1 // pred_check
      _
    $region11: #{tpu_custom_call.1} parent=1 // pred_check_branch
      %40 = sbr.rel (0) target = $region13
    $region12: #{tpu_custom_call.1} parent=1 // pred_region
      %s42 = ssub.s32 1024, 1024
      %43 = vsyncadd [#allocation6], %s42
      %s44 = sshll.u32 [#allocation7], 4
      %s45 = int_to_ptr.vmem [resolvable:$true] %s44
      %50 = dma.hbm_to_vmem [thread:$0]  %s2, 1024, %s45, [#allocation6], 64, 64, 4
    $region13: #{tpu_custom_call.1} parent=1 // pred_fallthru
      _
    // Predicated region
    $region14: #{tpu_custom_call.1} parent=1 // pred_check
      _
    $region15: #{tpu_custom_call.1} parent=1 // pred_check_branch
      %52 = sbr.rel (0) target = $region17
    $region16: #{tpu_custom_call.1} parent=1 // pred_region
      %s54 = ssub.s32 1024, 1024
      %55 = vsyncadd [#allocation9], %s54
      %s56 = sshll.u32 [#allocation8], 4
      %s57 = int_to_ptr.vmem [resolvable:$true] %s56
      %62 = dma.hbm_to_vmem [thread:$0]  %s3, 1024, %s57, [#allocation9], 64, 64, 4
    $region17: #{tpu_custom_call.1} parent=1 // pred_fallthru
      _
    // Predicated region
    $region18: #{tpu_custom_call.1} parent=1 // pred_check
      _
    $region19: #{tpu_custom_call.1} parent=1 // pred_check_branch
      %64 = sbr.rel (0) target = $region21
    $region20: #{tpu_custom_call.1} parent=1 // pred_region
      %s66 = ssub.s32 1024, 1024
      %67 = vsyncadd [#allocation9], %s66
      %s68 = sshll.u32 [#allocation10], 4
      %s69 = int_to_ptr.vmem [resolvable:$true] %s68
      %74 = dma.hbm_to_vmem [thread:$0]  %s4, 1024, %s69, [#allocation9], 64, 64, 4
    $region21: #{tpu_custom_call.1} parent=1 // pred_fallthru
      _
    // Predicated region
    $region22: #{tpu_custom_call.1} parent=1 // pred_check
      _
    $region23: #{tpu_custom_call.1} parent=1 // pred_check_branch
      %76 = sbr.rel (0) target = $region25
    $region24: #{tpu_custom_call.1} parent=1 // pred_region
      _
    $region25: #{tpu_custom_call.1} parent=1 // pred_fallthru
      _
    // Predicated region
    $region26: #{tpu_custom_call.1} parent=1 // pred_check
      _
    $region27: #{tpu_custom_call.1} parent=1 // pred_check_branch
      %78 = sbr.rel (0) target = $region29
    $region28: #{tpu_custom_call.1} parent=1 // pred_region
      %79 = dma.done [#allocation3], 1024
    $region29: #{tpu_custom_call.1} parent=1 // pred_fallthru
      _
    // Predicated region
    $region30: #{tpu_custom_call.1} parent=1 // pred_check
      _
    $region31: #{tpu_custom_call.1} parent=1 // pred_check_branch
      %81 = sbr.rel (0) target = $region33
    $region32: #{tpu_custom_call.1} parent=1 // pred_region
      %82 = dma.done [#allocation6], 128
    $region33: #{tpu_custom_call.1} parent=1 // pred_fallthru
      _
    // Predicated region
    $region34: #{tpu_custom_call.1} parent=1 // pred_check
      _
    $region35: #{tpu_custom_call.1} parent=1 // pred_check_branch
      %84 = sbr.rel (0) target = $region37
    $region36: #{tpu_custom_call.1} parent=1 // pred_region
      %85 = dma.done [#allocation6], 1024
    $region37: #{tpu_custom_call.1} parent=1 // pred_fallthru
      _
    // Predicated region
    $region38: #{tpu_custom_call.1} parent=1 // pred_check
      _
    $region39: #{tpu_custom_call.1} parent=1 // pred_check_branch
      %87 = sbr.rel (0) target = $region41
    $region40: #{tpu_custom_call.1} parent=1 // pred_region
      %88 = dma.done [#allocation9], 1024
    $region41: #{tpu_custom_call.1} parent=1 // pred_fallthru
      _
    // Predicated region
    $region42: #{tpu_custom_call.1} parent=1 // pred_check
      _
    $region43: #{tpu_custom_call.1} parent=1 // pred_check_branch
      %90 = sbr.rel (0) target = $region45
    $region44: #{tpu_custom_call.1} parent=1 // pred_region
      %91 = dma.done [#allocation9], 1024
    $region45: #{tpu_custom_call.1} parent=1 // pred_fallthru
      _
    %v93 = vld [vmem:[#allocation2] sm:$0x1]
    %v94 = vld [vmem:[#allocation2 + $0x1] sm:$0x1]
    %v95 = vld [vmem:[#allocation2 + $0x2] sm:$0x1]
    %v96 = vld [vmem:[#allocation2 + $0x3] sm:$0x1]
    %v97 = vld [vmem:[#allocation2 + $0x4] sm:$0x1]
    %v98 = vld [vmem:[#allocation2 + $0x5] sm:$0x1]
    %v99 = vld [vmem:[#allocation2 + $0x6] sm:$0x1]
    %v100 = vld [vmem:[#allocation2 + $0x7] sm:$0x1]
    %v101 = vld [vmem:[#allocation2 + $0x8] sm:$0x1]
    %v102 = vld [vmem:[#allocation2 + $0x9] sm:$0x1]
    %v103 = vld [vmem:[#allocation2 + $0xa] sm:$0x1]
    %v104 = vld [vmem:[#allocation2 + $0xb] sm:$0x1]
    %v105 = vld [vmem:[#allocation2 + $0xc] sm:$0x1]
    %v106 = vld [vmem:[#allocation2 + $0xd] sm:$0x1]
    %v107 = vld [vmem:[#allocation2 + $0xe] sm:$0x1]
    %v108 = vld [vmem:[#allocation2 + $0xf] sm:$0x1]
    %v109 = vld [vmem:[#allocation2 + $0x10] sm:$0x1]
    %v110 = vld [vmem:[#allocation2 + $0x11] sm:$0x1]
    %v111 = vld [vmem:[#allocation2 + $0x12] sm:$0x1]
    %v112 = vld [vmem:[#allocation2 + $0x13] sm:$0x1]
    %v113 = vld [vmem:[#allocation2 + $0x14] sm:$0x1]
    %v114 = vld [vmem:[#allocation2 + $0x15] sm:$0x1]
    %v115 = vld [vmem:[#allocation2 + $0x16] sm:$0x1]
    %v116 = vld [vmem:[#allocation2 + $0x17] sm:$0x1]
    %v117 = vld [vmem:[#allocation2 + $0x18] sm:$0x1]
    %v118 = vld [vmem:[#allocation2 + $0x19] sm:$0x1]
    %v119 = vld [vmem:[#allocation2 + $0x1a] sm:$0x1]
    %v120 = vld [vmem:[#allocation2 + $0x1b] sm:$0x1]
    %v121 = vld [vmem:[#allocation2 + $0x1c] sm:$0x1]
    %v122 = vld [vmem:[#allocation2 + $0x1d] sm:$0x1]
    %v123 = vld [vmem:[#allocation2 + $0x1e] sm:$0x1]
    %v124 = vld [vmem:[#allocation2 + $0x1f] sm:$0x1]
    %v125 = vld [vmem:[#allocation2 + $0x20] sm:$0x1]
    %v126 = vld [vmem:[#allocation2 + $0x21] sm:$0x1]
    %v127 = vld [vmem:[#allocation2 + $0x22] sm:$0x1]
    %v128 = vld [vmem:[#allocation2 + $0x23] sm:$0x1]
    %v129 = vld [vmem:[#allocation2 + $0x24] sm:$0x1]
    %v130 = vld [vmem:[#allocation2 + $0x25] sm:$0x1]
    %v131 = vld [vmem:[#allocation2 + $0x26] sm:$0x1]
    %v132 = vld [vmem:[#allocation2 + $0x27] sm:$0x1]
    %v133 = vld [vmem:[#allocation2 + $0x28] sm:$0x1]
    %v134 = vld [vmem:[#allocation2 + $0x29] sm:$0x1]
    %v135 = vld [vmem:[#allocation2 + $0x2a] sm:$0x1]
    %v136 = vld [vmem:[#allocation2 + $0x2b] sm:$0x1]
    %v137 = vld [vmem:[#allocation2 + $0x2c] sm:$0x1]
    %v138 = vld [vmem:[#allocation2 + $0x2d] sm:$0x1]
    %v139 = vld [vmem:[#allocation2 + $0x2e] sm:$0x1]
    %v140 = vld [vmem:[#allocation2 + $0x2f] sm:$0x1]
    %v141 = vld [vmem:[#allocation2 + $0x30] sm:$0x1]
    %v142 = vld [vmem:[#allocation2 + $0x31] sm:$0x1]
    %v143 = vld [vmem:[#allocation2 + $0x32] sm:$0x1]
    %v144 = vld [vmem:[#allocation2 + $0x33] sm:$0x1]
    %v145 = vld [vmem:[#allocation2 + $0x34] sm:$0x1]
    %v146 = vld [vmem:[#allocation2 + $0x35] sm:$0x1]
    %v147 = vld [vmem:[#allocation2 + $0x36] sm:$0x1]
    %v148 = vld [vmem:[#allocation2 + $0x37] sm:$0x1]
    %v149 = vld [vmem:[#allocation2 + $0x38] sm:$0x1]
    %v150 = vld [vmem:[#allocation2 + $0x39] sm:$0x1]
    %v151 = vld [vmem:[#allocation2 + $0x3a] sm:$0x1]
    %v152 = vld [vmem:[#allocation2 + $0x3b] sm:$0x1]
    %v153 = vld [vmem:[#allocation2 + $0x3c] sm:$0x1]
    %v154 = vld [vmem:[#allocation2 + $0x3d] sm:$0x1]
    %v155 = vld [vmem:[#allocation2 + $0x3e] sm:$0x1]
    %v156 = vld [vmem:[#allocation2 + $0x3f] sm:$0x1]
    %v157 = vld [vmem:[%s5] sm:$0x1]
    %v158 = vld [vmem:[%s5 + $0x1] sm:$0x1]
    %v159 = vld [vmem:[%s5 + $0x2] sm:$0x1]
    %v160 = vld [vmem:[%s5 + $0x3] sm:$0x1]
    %v161 = vld [vmem:[#allocation5] sm:$0xf]
    %v162 = vld [vmem:[#allocation5 + $0x4] sm:$0xf]
    %v164 = vlaneseq
    %v165 = vshrl.u32 %v164, 7
    %v166 = vsub.s32 0, %v165
    %v167 = vrot.slane %v157, %v166
    %v233 = vcombine.low %v93, %v94
    %v234 = vcombine.low %v95, %v96
    %v235 = vcombine.low %v97, %v98
    %v236 = vcombine.low %v99, %v100
    %v238 = vunpack.c.l.s4 1966171168
    %v239 = vunpack.c.0.s8 %v238
    %v240 = vlaneseq
    %v241 = vshrl.u32 %v240, 7
    %v242 = vsub.s32 %v239, %v241
    %v243 = vrot.slane %v233, %v242
    %v245 = vunpack.c.l.s4 1966171168
    %v246 = vunpack.c.0.s8 %v245
    %v247 = vlaneseq
    %v248 = vshrl.u32 %v247, 7
    %v249 = vsub.s32 %v246, %v248
    %v250 = vrot.slane %v234, %v249
    %v252 = vunpack.c.l.s4 1966171168
    %v253 = vunpack.c.0.s8 %v252
    %v254 = vlaneseq
    %v255 = vshrl.u32 %v254, 7
    %v256 = vsub.s32 %v253, %v255
    %v257 = vrot.slane %v235, %v256
    %v259 = vunpack.c.l.s4 1966171168
    %v260 = vunpack.c.0.s8 %v259
    %v261 = vlaneseq
    %v262 = vshrl.u32 %v261, 7
    %v263 = vsub.s32 %v260, %v262
    %v264 = vrot.slane %v236, %v263
    %v265 = vcombine.low %v243, %v250
    %v266 = vcombine.low %v257, %v264
    %v268 = vunpack.c.l.s4 1966171168
    %v269 = vunpack.c.0.s8 %v268
    %v270 = vlaneseq
    %v271 = vshrl.u32 %v270, 7
    %v272 = vsub.s32 %v269, %v271
    %v273 = vrot.slane %v265, %v272
    %v275 = vunpack.c.l.s4 1966171168
    %v276 = vunpack.c.0.s8 %v275
    %v277 = vlaneseq
    %v278 = vshrl.u32 %v277, 7
    %v279 = vsub.s32 %v276, %v278
    %v280 = vrot.slane %v266, %v279
    %v281 = vcombine.low %v273, %v280
    %v282 = vcombine.low %v101, %v102
    %v283 = vcombine.low %v103, %v104
    %v284 = vcombine.low %v105, %v106
    %v285 = vcombine.low %v107, %v108
    %v287 = vunpack.c.l.s4 1966171168
    %v288 = vunpack.c.0.s8 %v287
    %v289 = vlaneseq
    %v290 = vshrl.u32 %v289, 7
    %v291 = vsub.s32 %v288, %v290
    %v292 = vrot.slane %v282, %v291
    %v294 = vunpack.c.l.s4 1966171168
    %v295 = vunpack.c.0.s8 %v294
    %v296 = vlaneseq
    %v297 = vshrl.u32 %v296, 7
    %v298 = vsub.s32 %v295, %v297
    %v299 = vrot.slane %v283, %v298
    %v301 = vunpack.c.l.s4 1966171168
    %v302 = vunpack.c.0.s8 %v301
    %v303 = vlaneseq
    %v304 = vshrl.u32 %v303, 7
    %v305 = vsub.s32 %v302, %v304
    %v306 = vrot.slane %v284, %v305
    %v308 = vunpack.c.l.s4 1966171168
    %v309 = vunpack.c.0.s8 %v308
    %v310 = vlaneseq
    %v311 = vshrl.u32 %v310, 7
    %v312 = vsub.s32 %v309, %v311
    %v313 = vrot.slane %v285, %v312
    %v314 = vcombine.low %v292, %v299
    %v315 = vcombine.low %v306, %v313
    %v317 = vunpack.c.l.s4 1966171168
    %v318 = vunpack.c.0.s8 %v317
    %v319 = vlaneseq
    %v320 = vshrl.u32 %v319, 7
    %v321 = vsub.s32 %v318, %v320
    %v322 = vrot.slane %v314, %v321
    %v324 = vunpack.c.l.s4 1966171168
    %v325 = vunpack.c.0.s8 %v324
    %v326 = vlaneseq
    %v327 = vshrl.u32 %v326, 7
    %v328 = vsub.s32 %v325, %v327
    %v329 = vrot.slane %v315, %v328
    %v330 = vcombine.low %v322, %v329
    %v331 = vcombine.low %v109, %v110
    %v332 = vcombine.low %v111, %v112
    %v333 = vcombine.low %v113, %v114
    %v334 = vcombine.low %v115, %v116
    %v336 = vunpack.c.l.s4 1966171168
    %v337 = vunpack.c.0.s8 %v336
    %v338 = vlaneseq
    %v339 = vshrl.u32 %v338, 7
    %v340 = vsub.s32 %v337, %v339
    %v341 = vrot.slane %v331, %v340
    %v343 = vunpack.c.l.s4 1966171168
    %v344 = vunpack.c.0.s8 %v343
    %v345 = vlaneseq
    %v346 = vshrl.u32 %v345, 7
    %v347 = vsub.s32 %v344, %v346
    %v348 = vrot.slane %v332, %v347
    %v350 = vunpack.c.l.s4 1966171168
    %v351 = vunpack.c.0.s8 %v350
    %v352 = vlaneseq
    %v353 = vshrl.u32 %v352, 7
    %v354 = vsub.s32 %v351, %v353
    %v355 = vrot.slane %v333, %v354
    %v357 = vunpack.c.l.s4 1966171168
    %v358 = vunpack.c.0.s8 %v357
    %v359 = vlaneseq
    %v360 = vshrl.u32 %v359, 7
    %v361 = vsub.s32 %v358, %v360
    %v362 = vrot.slane %v334, %v361
    %v363 = vcombine.low %v341, %v348
    %v364 = vcombine.low %v355, %v362
    %v366 = vunpack.c.l.s4 1966171168
    %v367 = vunpack.c.0.s8 %v366
    %v368 = vlaneseq
    %v369 = vshrl.u32 %v368, 7
    %v370 = vsub.s32 %v367, %v369
    %v371 = vrot.slane %v363, %v370
    %v373 = vunpack.c.l.s4 1966171168
    %v374 = vunpack.c.0.s8 %v373
    %v375 = vlaneseq
    %v376 = vshrl.u32 %v375, 7
    %v377 = vsub.s32 %v374, %v376
    %v378 = vrot.slane %v364, %v377
    %v379 = vcombine.low %v371, %v378
    %v380 = vcombine.low %v117, %v118
    %v381 = vcombine.low %v119, %v120
    %v382 = vcombine.low %v121, %v122
    %v383 = vcombine.low %v123, %v124
    %v385 = vunpack.c.l.s4 1966171168
    %v386 = vunpack.c.0.s8 %v385
    %v387 = vlaneseq
    %v388 = vshrl.u32 %v387, 7
    %v389 = vsub.s32 %v386, %v388
    %v390 = vrot.slane %v380, %v389
    %v392 = vunpack.c.l.s4 1966171168
    %v393 = vunpack.c.0.s8 %v392
    %v394 = vlaneseq
    %v395 = vshrl.u32 %v394, 7
    %v396 = vsub.s32 %v393, %v395
    %v397 = vrot.slane %v381, %v396
    %v399 = vunpack.c.l.s4 1966171168
    %v400 = vunpack.c.0.s8 %v399
    %v401 = vlaneseq
    %v402 = vshrl.u32 %v401, 7
    %v403 = vsub.s32 %v400, %v402
    %v404 = vrot.slane %v382, %v403
    %v406 = vunpack.c.l.s4 1966171168
    %v407 = vunpack.c.0.s8 %v406
    %v408 = vlaneseq
    %v409 = vshrl.u32 %v408, 7
    %v410 = vsub.s32 %v407, %v409
    %v411 = vrot.slane %v383, %v410
    %v412 = vcombine.low %v390, %v397
    %v413 = vcombine.low %v404, %v411
    %v415 = vunpack.c.l.s4 1966171168
    %v416 = vunpack.c.0.s8 %v415
    %v417 = vlaneseq
    %v418 = vshrl.u32 %v417, 7
    %v419 = vsub.s32 %v416, %v418
    %v420 = vrot.slane %v412, %v419
    %v422 = vunpack.c.l.s4 1966171168
    %v423 = vunpack.c.0.s8 %v422
    %v424 = vlaneseq
    %v425 = vshrl.u32 %v424, 7
    %v426 = vsub.s32 %v423, %v425
    %v427 = vrot.slane %v413, %v426
    %v428 = vcombine.low %v420, %v427
    %v429 = vcombine.low %v125, %v126
    %v430 = vcombine.low %v127, %v128
    %v431 = vcombine.low %v129, %v130
    %v432 = vcombine.low %v131, %v132
    %v434 = vunpack.c.l.s4 1966171168
    %v435 = vunpack.c.0.s8 %v434
    %v436 = vlaneseq
    %v437 = vshrl.u32 %v436, 7
    %v438 = vsub.s32 %v435, %v437
    %v439 = vrot.slane %v429, %v438
    %v441 = vunpack.c.l.s4 1966171168
    %v442 = vunpack.c.0.s8 %v441
    %v443 = vlaneseq
    %v444 = vshrl.u32 %v443, 7
    %v445 = vsub.s32 %v442, %v444
    %v446 = vrot.slane %v430, %v445
    %v448 = vunpack.c.l.s4 1966171168
    %v449 = vunpack.c.0.s8 %v448
    %v450 = vlaneseq
    %v451 = vshrl.u32 %v450, 7
    %v452 = vsub.s32 %v449, %v451
    %v453 = vrot.slane %v431, %v452
    %v455 = vunpack.c.l.s4 1966171168
    %v456 = vunpack.c.0.s8 %v455
    %v457 = vlaneseq
    %v458 = vshrl.u32 %v457, 7
    %v459 = vsub.s32 %v456, %v458
    %v460 = vrot.slane %v432, %v459
    %v461 = vcombine.low %v439, %v446
    %v462 = vcombine.low %v453, %v460
    %v464 = vunpack.c.l.s4 1966171168
    %v465 = vunpack.c.0.s8 %v464
    %v466 = vlaneseq
    %v467 = vshrl.u32 %v466, 7
    %v468 = vsub.s32 %v465, %v467
    %v469 = vrot.slane %v461, %v468
    %v471 = vunpack.c.l.s4 1966171168
    %v472 = vunpack.c.0.s8 %v471
    %v473 = vlaneseq
    %v474 = vshrl.u32 %v473, 7
    %v475 = vsub.s32 %v472, %v474
    %v476 = vrot.slane %v462, %v475
    %v477 = vcombine.low %v469, %v476
    %v478 = vcombine.low %v133, %v134
    %v479 = vcombine.low %v135, %v136
    %v480 = vcombine.low %v137, %v138
    %v481 = vcombine.low %v139, %v140
    %v483 = vunpack.c.l.s4 1966171168
    %v484 = vunpack.c.0.s8 %v483
    %v485 = vlaneseq
    %v486 = vshrl.u32 %v485, 7
    %v487 = vsub.s32 %v484, %v486
    %v488 = vrot.slane %v478, %v487
    %v490 = vunpack.c.l.s4 1966171168
    %v491 = vunpack.c.0.s8 %v490
    %v492 = vlaneseq
    %v493 = vshrl.u32 %v492, 7
    %v494 = vsub.s32 %v491, %v493
    %v495 = vrot.slane %v479, %v494
    %v497 = vunpack.c.l.s4 1966171168
    %v498 = vunpack.c.0.s8 %v497
    %v499 = vlaneseq
    %v500 = vshrl.u32 %v499, 7
    %v501 = vsub.s32 %v498, %v500
    %v502 = vrot.slane %v480, %v501
    %v504 = vunpack.c.l.s4 1966171168
    %v505 = vunpack.c.0.s8 %v504
    %v506 = vlaneseq
    %v507 = vshrl.u32 %v506, 7
    %v508 = vsub.s32 %v505, %v507
    %v509 = vrot.slane %v481, %v508
    %v510 = vcombine.low %v488, %v495
    %v511 = vcombine.low %v502, %v509
    %v513 = vunpack.c.l.s4 1966171168
    %v514 = vunpack.c.0.s8 %v513
    %v515 = vlaneseq
    %v516 = vshrl.u32 %v515, 7
    %v517 = vsub.s32 %v514, %v516
    %v518 = vrot.slane %v510, %v517
    %v520 = vunpack.c.l.s4 1966171168
    %v521 = vunpack.c.0.s8 %v520
    %v522 = vlaneseq
    %v523 = vshrl.u32 %v522, 7
    %v524 = vsub.s32 %v521, %v523
    %v525 = vrot.slane %v511, %v524
    %v526 = vcombine.low %v518, %v525
    %v527 = vcombine.low %v141, %v142
    %v528 = vcombine.low %v143, %v144
    %v529 = vcombine.low %v145, %v146
    %v530 = vcombine.low %v147, %v148
    %v532 = vunpack.c.l.s4 1966171168
    %v533 = vunpack.c.0.s8 %v532
    %v534 = vlaneseq
    %v535 = vshrl.u32 %v534, 7
    %v536 = vsub.s32 %v533, %v535
    %v537 = vrot.slane %v527, %v536
    %v539 = vunpack.c.l.s4 1966171168
    %v540 = vunpack.c.0.s8 %v539
    %v541 = vlaneseq
    %v542 = vshrl.u32 %v541, 7
    %v543 = vsub.s32 %v540, %v542
    %v544 = vrot.slane %v528, %v543
    %v546 = vunpack.c.l.s4 1966171168
    %v547 = vunpack.c.0.s8 %v546
    %v548 = vlaneseq
    %v549 = vshrl.u32 %v548, 7
    %v550 = vsub.s32 %v547, %v549
    %v551 = vrot.slane %v529, %v550
    %v553 = vunpack.c.l.s4 1966171168
    %v554 = vunpack.c.0.s8 %v553
    %v555 = vlaneseq
    %v556 = vshrl.u32 %v555, 7
    %v557 = vsub.s32 %v554, %v556
    %v558 = vrot.slane %v530, %v557
    %v559 = vcombine.low %v537, %v544
    %v560 = vcombine.low %v551, %v558
    %v562 = vunpack.c.l.s4 1966171168
    %v563 = vunpack.c.0.s8 %v562
    %v564 = vlaneseq
    %v565 = vshrl.u32 %v564, 7
    %v566 = vsub.s32 %v563, %v565
    %v567 = vrot.slane %v559, %v566
    %v569 = vunpack.c.l.s4 1966171168
    %v570 = vunpack.c.0.s8 %v569
    %v571 = vlaneseq
    %v572 = vshrl.u32 %v571, 7
    %v573 = vsub.s32 %v570, %v572
    %v574 = vrot.slane %v560, %v573
    %v575 = vcombine.low %v567, %v574
    %v576 = vcombine.low %v149, %v150
    %v577 = vcombine.low %v151, %v152
    %v578 = vcombine.low %v153, %v154
    %v579 = vcombine.low %v155, %v156
    %v581 = vunpack.c.l.s4 1966171168
    %v582 = vunpack.c.0.s8 %v581
    %v583 = vlaneseq
    %v584 = vshrl.u32 %v583, 7
    %v585 = vsub.s32 %v582, %v584
    %v586 = vrot.slane %v576, %v585
    %v588 = vunpack.c.l.s4 1966171168
    %v589 = vunpack.c.0.s8 %v588
    %v590 = vlaneseq
    %v591 = vshrl.u32 %v590, 7
    %v592 = vsub.s32 %v589, %v591
    %v593 = vrot.slane %v577, %v592
    %v595 = vunpack.c.l.s4 1966171168
    %v596 = vunpack.c.0.s8 %v595
    %v597 = vlaneseq
    %v598 = vshrl.u32 %v597, 7
    %v599 = vsub.s32 %v596, %v598
    %v600 = vrot.slane %v578, %v599
    %v602 = vunpack.c.l.s4 1966171168
    %v603 = vunpack.c.0.s8 %v602
    %v604 = vlaneseq
    %v605 = vshrl.u32 %v604, 7
    %v606 = vsub.s32 %v603, %v605
    %v607 = vrot.slane %v579, %v606
    %v608 = vcombine.low %v586, %v593
    %v609 = vcombine.low %v600, %v607
    %v611 = vunpack.c.l.s4 1966171168
    %v612 = vunpack.c.0.s8 %v611
    %v613 = vlaneseq
    %v614 = vshrl.u32 %v613, 7
    %v615 = vsub.s32 %v612, %v614
    %v616 = vrot.slane %v608, %v615
    %v618 = vunpack.c.l.s4 1966171168
    %v619 = vunpack.c.0.s8 %v618
    %v620 = vlaneseq
    %v621 = vshrl.u32 %v620, 7
    %v622 = vsub.s32 %v619, %v621
    %v623 = vrot.slane %v609, %v622
    %v624 = vcombine.low %v616, %v623
    %v627 = vunpack.c.l.b16 %v161
    %v628 = vunpack.c.l.b16 %v162
    %v629 = vpack.c.b16 %v628, %v627
    %vm631 = vcmask 130048
    %v633 = vsel %vm631, %v281, 0
    %v636 = vsel %vm631, %v330, 0
    %v639 = vsel %vm631, %v379, 0
    %v642 = vsel %vm631, %v428, 0
    %v645 = vsel %vm631, %v477, 0
    %v648 = vsel %vm631, %v526, 0
    %v651 = vsel %vm631, %v575, 0
    %v654 = vsel %vm631, %v624, 0
    %656 = vmatprep.subr.bf16.mxu0 0
    %657 = vmatpush1.bf16.msra.mxu0 %v629
    %658 = vmatprep.subr.bf16.mxu0 0
    %659 = vmatpush1.bf16.msra.mxu0 0
    %660 = vmatprep.subr.bf16.mxu0 0
    %661 = vmatpush1.bf16.msra.mxu0 0
    %662 = vmatprep.subr.bf16.mxu0 0
    %663 = vmatpush1.bf16.msra.mxu0 0
    %664 = vmatprep.subr.bf16.mxu0 0
    %665 = vmatpush1.bf16.msra.mxu0 0
    %666 = vmatprep.subr.bf16.mxu0 0
    %667 = vmatpush1.bf16.msra.mxu0 0
    %668 = vmatprep.subr.bf16.mxu0 0
    %669 = vmatpush1.bf16.msra.mxu0 0
    %670 = vmatprep.subr.bf16.mxu0 0
    %671 = vmatpush1.bf16.msra.mxu0 0
    %672 = vmatprep.subr.bf16.mxu0 0
    %673 = vmatpush1.bf16.msra.mxu0 0
    %674 = vmatprep.subr.bf16.mxu0 0
    %675 = vmatpush1.bf16.msra.mxu0 0
    %676 = vmatprep.subr.bf16.mxu0 0
    %677 = vmatpush1.bf16.msra.mxu0 0
    %678 = vmatprep.subr.bf16.mxu0 0
    %679 = vmatpush1.bf16.msra.mxu0 0
    %680 = vmatprep.subr.bf16.mxu0 0
    %681 = vmatpush1.bf16.msra.mxu0 0
    %682 = vmatprep.subr.bf16.mxu0 0
    %683 = vmatpush1.bf16.msra.mxu0 0
    %684 = vmatprep.subr.bf16.mxu0 0
    %685 = vmatpush1.bf16.msra.mxu0 0
    %686 = vmatprep.subr.bf16.mxu0 0
    %687 = vmatpush1.bf16.msra.mxu0 0
    %688 = vmatprep.mubr.bf16.mxu0 0
    %689 = vmatmul.mubr.bf16.gmra.mrb[0].mxu0 %v633
    %v690 = vpop.f32.mrb[0].mxu0
    %v691 = vadd.f32 %v167, %v690
    %v692 = vpop.f32.mrb[0].mxu0
    %v693 = vpop.f32.mrb[0].mxu0
    %v694 = vadd.f32 %v167, %v693
    %v695 = vpop.f32.mrb[0].mxu0
    %696 = vmatprep.mubr.bf16.mxu0 0
    %697 = vmatmul.mubr.bf16.gmra.mrb[0].mxu0 %v636
    %v698 = vpop.f32.mrb[0].mxu0
    %v699 = vadd.f32 %v167, %v698
    %v700 = vpop.f32.mrb[0].mxu0
    %v701 = vpop.f32.mrb[0].mxu0
    %v702 = vadd.f32 %v167, %v701
    %v703 = vpop.f32.mrb[0].mxu0
    %704 = vmatprep.mubr.bf16.mxu0 0
    %705 = vmatmul.mubr.bf16.gmra.mrb[0].mxu0 %v639
    %v706 = vpop.f32.mrb[0].mxu0
    %v707 = vadd.f32 %v167, %v706
    %v708 = vpop.f32.mrb[0].mxu0
    %v709 = vpop.f32.mrb[0].mxu0
    %v710 = vadd.f32 %v167, %v709
    %v711 = vpop.f32.mrb[0].mxu0
    %712 = vmatprep.mubr.bf16.mxu0 0
    %713 = vmatmul.mubr.bf16.gmra.mrb[0].mxu0 %v642
    %v714 = vpop.f32.mrb[0].mxu0
    %v715 = vadd.f32 %v167, %v714
    %v716 = vpop.f32.mrb[0].mxu0
    %v717 = vpop.f32.mrb[0].mxu0
    %v718 = vadd.f32 %v167, %v717
    %v719 = vpop.f32.mrb[0].mxu0
    %720 = vmatprep.mubr.bf16.mxu0 0
    %721 = vmatmul.mubr.bf16.gmra.mrb[0].mxu0 %v645
    %v722 = vpop.f32.mrb[0].mxu0
    %v723 = vadd.f32 %v167, %v722
    %v724 = vpop.f32.mrb[0].mxu0
    %v725 = vpop.f32.mrb[0].mxu0
    %v726 = vadd.f32 %v167, %v725
    %v727 = vpop.f32.mrb[0].mxu0
    %728 = vmatprep.mubr.bf16.mxu0 0
    %729 = vmatmul.mubr.bf16.gmra.mrb[0].mxu0 %v648
    %v730 = vpop.f32.mrb[0].mxu0
    %v731 = vadd.f32 %v167, %v730
    %v732 = vpop.f32.mrb[0].mxu0
    %v733 = vpop.f32.mrb[0].mxu0
    %v734 = vadd.f32 %v167, %v733
    %v735 = vpop.f32.mrb[0].mxu0
    %736 = vmatprep.mubr.bf16.mxu0 0
    %737 = vmatmul.mubr.bf16.gmra.mrb[0].mxu0 %v651
    %v738 = vpop.f32.mrb[0].mxu0
    %v739 = vadd.f32 %v167, %v738
    %v740 = vpop.f32.mrb[0].mxu0
    %v741 = vpop.f32.mrb[0].mxu0
    %v742 = vadd.f32 %v167, %v741
    %v743 = vpop.f32.mrb[0].mxu0
    %744 = vmatprep.mubr.bf16.mxu0 0
    %745 = vmatmul.mubr.bf16.gmra.mrb[0].mxu0 %v654
    %v746 = vpop.f32.mrb[0].mxu0
    %v747 = vadd.f32 %v167, %v746
    %v748 = vpop.f32.mrb[0].mxu0
    %v749 = vpop.f32.mrb[0].mxu0
    %v750 = vadd.f32 %v167, %v749
    %v751 = vpop.f32.mrb[0].mxu0
    %752 = vdwg.mxu0
    %v753 = vmax.f32 %v691, 0.0
    %v754 = vmax.f32 %v694, 0.0
    %v755 = vmax.f32 %v699, 0.0
    %v756 = vmax.f32 %v702, 0.0
    %v757 = vmax.f32 %v707, 0.0
    %v758 = vmax.f32 %v710, 0.0
    %v759 = vmax.f32 %v715, 0.0
    %v760 = vmax.f32 %v718, 0.0
    %v761 = vmax.f32 %v723, 0.0
    %v762 = vmax.f32 %v726, 0.0
    %v763 = vmax.f32 %v731, 0.0
    %v764 = vmax.f32 %v734, 0.0
    %v765 = vmax.f32 %v739, 0.0
    %v766 = vmax.f32 %v742, 0.0
    %v767 = vmax.f32 %v747, 0.0
    %v768 = vmax.f32 %v750, 0.0
    %v769 = vpack.c.bf16 %v754, %v753
    %v770 = vpack.c.bf16 %v756, %v755
    %v771 = vpack.c.bf16 %v758, %v757
    %v772 = vpack.c.bf16 %v760, %v759
    %v773 = vpack.c.bf16 %v762, %v761
    %v774 = vpack.c.bf16 %v764, %v763
    %v775 = vpack.c.bf16 %v766, %v765
    %v776 = vpack.c.bf16 %v768, %v767
    %v777 = vld [vmem:[#allocation7] sm:$0xf]
    %v778 = vld [vmem:[#allocation7 + $0x4] sm:$0xf]
    %v779 = vld [vmem:[#allocation7 + $0x8] sm:$0xf]
    %v780 = vld [vmem:[#allocation7 + $0xc] sm:$0xf]
    %v781 = vld [vmem:[#allocation7 + $0x10] sm:$0xf]
    %v782 = vld [vmem:[#allocation7 + $0x14] sm:$0xf]
    %v783 = vld [vmem:[#allocation7 + $0x18] sm:$0xf]
    %v784 = vld [vmem:[#allocation7 + $0x1c] sm:$0xf]
    %v785 = vld [vmem:[#allocation7 + $0x20] sm:$0xf]
    %v786 = vld [vmem:[#allocation7 + $0x24] sm:$0xf]
    %v787 = vld [vmem:[#allocation7 + $0x28] sm:$0xf]
    %v788 = vld [vmem:[#allocation7 + $0x2c] sm:$0xf]
    %v789 = vld [vmem:[#allocation7 + $0x30] sm:$0xf]
    %v790 = vld [vmem:[#allocation7 + $0x34] sm:$0xf]
    %v791 = vld [vmem:[#allocation7 + $0x38] sm:$0xf]
    %v792 = vld [vmem:[#allocation7 + $0x3c] sm:$0xf]
    %v794 = vlaneseq
    %v795 = vshrl.u32 %v794, 7
    %v796 = vsub.s32 0, %v795
    %v797 = vrot.slane %v158, %v796
    %v815 = vunpack.c.l.b16 %v777
    %v816 = vunpack.c.l.b16 %v778
    %v817 = vunpack.c.l.b16 %v779
    %v818 = vunpack.c.l.b16 %v780
    %v819 = vunpack.c.l.b16 %v781
    %v820 = vunpack.c.l.b16 %v782
    %v821 = vunpack.c.l.b16 %v783
    %v822 = vunpack.c.l.b16 %v784
    %v823 = vunpack.c.l.b16 %v785
    %v824 = vunpack.c.l.b16 %v786
    %v825 = vunpack.c.l.b16 %v787
    %v826 = vunpack.c.l.b16 %v788
    %v827 = vunpack.c.l.b16 %v789
    %v828 = vunpack.c.l.b16 %v790
    %v829 = vunpack.c.l.b16 %v791
    %v830 = vunpack.c.l.b16 %v792
    %v831 = vpack.c.b16 %v816, %v815
    %v832 = vpack.c.b16 %v818, %v817
    %v833 = vpack.c.b16 %v820, %v819
    %v834 = vpack.c.b16 %v822, %v821
    %v835 = vpack.c.b16 %v824, %v823
    %v836 = vpack.c.b16 %v826, %v825
    %v837 = vpack.c.b16 %v828, %v827
    %v838 = vpack.c.b16 %v830, %v829
    %847 = vmatprep.subr.bf16.mxu0 0
    %848 = vmatpush1.bf16.msra.mxu0 %v831
    %849 = vmatprep.subr.bf16.mxu0 0
    %850 = vmatpush1.bf16.msra.mxu0 %v832
    %851 = vmatprep.subr.bf16.mxu0 0
    %852 = vmatpush1.bf16.msra.mxu0 %v833
    %853 = vmatprep.subr.bf16.mxu0 0
    %854 = vmatpush1.bf16.msra.mxu0 %v834
    %855 = vmatprep.subr.bf16.mxu0 0
    %856 = vmatpush1.bf16.msra.mxu0 %v835
    %857 = vmatprep.subr.bf16.mxu0 0
    %858 = vmatpush1.bf16.msra.mxu0 %v836
    %859 = vmatprep.subr.bf16.mxu0 0
    %860 = vmatpush1.bf16.msra.mxu0 %v837
    %861 = vmatprep.subr.bf16.mxu0 0
    %862 = vmatpush1.bf16.msra.mxu0 %v838
    %863 = vmatprep.subr.bf16.mxu0 0
    %864 = vmatpush1.bf16.msra.mxu0 0
    %865 = vmatprep.subr.bf16.mxu0 0
    %866 = vmatpush1.bf16.msra.mxu0 0
    %867 = vmatprep.subr.bf16.mxu0 0
    %868 = vmatpush1.bf16.msra.mxu0 0
    %869 = vmatprep.subr.bf16.mxu0 0
    %870 = vmatpush1.bf16.msra.mxu0 0
    %871 = vmatprep.subr.bf16.mxu0 0
    %872 = vmatpush1.bf16.msra.mxu0 0
    %873 = vmatprep.subr.bf16.mxu0 0
    %874 = vmatpush1.bf16.msra.mxu0 0
    %875 = vmatprep.subr.bf16.mxu0 0
    %876 = vmatpush1.bf16.msra.mxu0 0
    %877 = vmatprep.subr.bf16.mxu0 0
    %878 = vmatpush1.bf16.msra.mxu0 0
    %879 = vmatprep.mubr.bf16.mxu0 0
    %880 = vmatmul.mubr.bf16.gmra.mrb[0].mxu0 %v769
    %v881 = vpop.f32.mrb[0].mxu0
    %v882 = vadd.f32 %v797, %v881
    %v883 = vpop.f32.mrb[0].mxu0
    %v884 = vpop.f32.mrb[0].mxu0
    %v885 = vadd.f32 %v797, %v884
    %v886 = vpop.f32.mrb[0].mxu0
    %887 = vmatprep.mubr.bf16.mxu0 0
    %888 = vmatmul.mubr.bf16.gmra.mrb[0].mxu0 %v770
    %v889 = vpop.f32.mrb[0].mxu0
    %v890 = vadd.f32 %v797, %v889
    %v891 = vpop.f32.mrb[0].mxu0
    %v892 = vpop.f32.mrb[0].mxu0
    %v893 = vadd.f32 %v797, %v892
    %v894 = vpop.f32.mrb[0].mxu0
    %895 = vmatprep.mubr.bf16.mxu0 0
    %896 = vmatmul.mubr.bf16.gmra.mrb[0].mxu0 %v771
    %v897 = vpop.f32.mrb[0].mxu0
    %v898 = vadd.f32 %v797, %v897
    %v899 = vpop.f32.mrb[0].mxu0
    %v900 = vpop.f32.mrb[0].mxu0
    %v901 = vadd.f32 %v797, %v900
    %v902 = vpop.f32.mrb[0].mxu0
    %903 = vmatprep.mubr.bf16.mxu0 0
    %904 = vmatmul.mubr.bf16.gmra.mrb[0].mxu0 %v772
    %v905 = vpop.f32.mrb[0].mxu0
    %v906 = vadd.f32 %v797, %v905
    %v907 = vpop.f32.mrb[0].mxu0
    %v908 = vpop.f32.mrb[0].mxu0
    %v909 = vadd.f32 %v797, %v908
    %v910 = vpop.f32.mrb[0].mxu0
    %911 = vmatprep.mubr.bf16.mxu0 0
    %912 = vmatmul.mubr.bf16.gmra.mrb[0].mxu0 %v773
    %v913 = vpop.f32.mrb[0].mxu0
    %v914 = vadd.f32 %v797, %v913
    %v915 = vpop.f32.mrb[0].mxu0
    %v916 = vpop.f32.mrb[0].mxu0
    %v917 = vadd.f32 %v797, %v916
    %v918 = vpop.f32.mrb[0].mxu0
    %919 = vmatprep.mubr.bf16.mxu0 0
    %920 = vmatmul.mubr.bf16.gmra.mrb[0].mxu0 %v774
    %v921 = vpop.f32.mrb[0].mxu0
    %v922 = vadd.f32 %v797, %v921
    %v923 = vpop.f32.mrb[0].mxu0
    %v924 = vpop.f32.mrb[0].mxu0
    %v925 = vadd.f32 %v797, %v924
    %v926 = vpop.f32.mrb[0].mxu0
    %927 = vmatprep.mubr.bf16.mxu0 0
    %928 = vmatmul.mubr.bf16.gmra.mrb[0].mxu0 %v775
    %v929 = vpop.f32.mrb[0].mxu0
    %v930 = vadd.f32 %v797, %v929
    %v931 = vpop.f32.mrb[0].mxu0
    %v932 = vpop.f32.mrb[0].mxu0
    %v933 = vadd.f32 %v797, %v932
    %v934 = vpop.f32.mrb[0].mxu0
    %935 = vmatprep.mubr.bf16.mxu0 0
    %936 = vmatmul.mubr.bf16.gmra.mrb[0].mxu0 %v776
    %v937 = vpop.f32.mrb[0].mxu0
    %v938 = vadd.f32 %v797, %v937
    %v939 = vpop.f32.mrb[0].mxu0
    %v940 = vpop.f32.mrb[0].mxu0
    %v941 = vadd.f32 %v797, %v940
    %v942 = vpop.f32.mrb[0].mxu0
    %943 = vdwg.mxu0
    %v944 = vmax.f32 %v882, 0.0
    %v945 = vmax.f32 %v885, 0.0
    %v946 = vmax.f32 %v890, 0.0
    %v947 = vmax.f32 %v893, 0.0
    %v948 = vmax.f32 %v898, 0.0
    %v949 = vmax.f32 %v901, 0.0
    %v950 = vmax.f32 %v906, 0.0
    %v951 = vmax.f32 %v909, 0.0
    %v952 = vmax.f32 %v914, 0.0
    %v953 = vmax.f32 %v917, 0.0
    %v954 = vmax.f32 %v922, 0.0
    %v955 = vmax.f32 %v925, 0.0
    %v956 = vmax.f32 %v930, 0.0
    %v957 = vmax.f32 %v933, 0.0
    %v958 = vmax.f32 %v938, 0.0
    %v959 = vmax.f32 %v941, 0.0
    %v960 = vpack.c.bf16 %v945, %v944
    %v961 = vpack.c.bf16 %v947, %v946
    %v962 = vpack.c.bf16 %v949, %v948
    %v963 = vpack.c.bf16 %v951, %v950
    %v964 = vpack.c.bf16 %v953, %v952
    %v965 = vpack.c.bf16 %v955, %v954
    %v966 = vpack.c.bf16 %v957, %v956
    %v967 = vpack.c.bf16 %v959, %v958
    %v968 = vld [vmem:[#allocation8] sm:$0xf]
    %v969 = vld [vmem:[#allocation8 + $0x4] sm:$0xf]
    %v970 = vld [vmem:[#allocation8 + $0x8] sm:$0xf]
    %v971 = vld [vmem:[#allocation8 + $0xc] sm:$0xf]
    %v972 = vld [vmem:[#allocation8 + $0x10] sm:$0xf]
    %v973 = vld [vmem:[#allocation8 + $0x14] sm:$0xf]
    %v974 = vld [vmem:[#allocation8 + $0x18] sm:$0xf]
    %v975 = vld [vmem:[#allocation8 + $0x1c] sm:$0xf]
    %v976 = vld [vmem:[#allocation8 + $0x20] sm:$0xf]
    %v977 = vld [vmem:[#allocation8 + $0x24] sm:$0xf]
    %v978 = vld [vmem:[#allocation8 + $0x28] sm:$0xf]
    %v979 = vld [vmem:[#allocation8 + $0x2c] sm:$0xf]
    %v980 = vld [vmem:[#allocation8 + $0x30] sm:$0xf]
    %v981 = vld [vmem:[#allocation8 + $0x34] sm:$0xf]
    %v982 = vld [vmem:[#allocation8 + $0x38] sm:$0xf]
    %v983 = vld [vmem:[#allocation8 + $0x3c] sm:$0xf]
    %v985 = vlaneseq
    %v986 = vshrl.u32 %v985, 7
    %v987 = vsub.s32 0, %v986
    %v988 = vrot.slane %v159, %v987
    %v1006 = vunpack.c.l.b16 %v968
    %v1007 = vunpack.c.l.b16 %v969
    %v1008 = vunpack.c.l.b16 %v970
    %v1009 = vunpack.c.l.b16 %v971
    %v1010 = vunpack.c.l.b16 %v972
    %v1011 = vunpack.c.l.b16 %v973
    %v1012 = vunpack.c.l.b16 %v974
    %v1013 = vunpack.c.l.b16 %v975
    %v1014 = vunpack.c.l.b16 %v976
    %v1015 = vunpack.c.l.b16 %v977
    %v1016 = vunpack.c.l.b16 %v978
    %v1017 = vunpack.c.l.b16 %v979
    %v1018 = vunpack.c.l.b16 %v980
    %v1019 = vunpack.c.l.b16 %v981
    %v1020 = vunpack.c.l.b16 %v982
    %v1021 = vunpack.c.l.b16 %v983
    %v1022 = vpack.c.b16 %v1007, %v1006
    %v1023 = vpack.c.b16 %v1009, %v1008
    %v1024 = vpack.c.b16 %v1011, %v1010
    %v1025 = vpack.c.b16 %v1013, %v1012
    %v1026 = vpack.c.b16 %v1015, %v1014
    %v1027 = vpack.c.b16 %v1017, %v1016
    %v1028 = vpack.c.b16 %v1019, %v1018
    %v1029 = vpack.c.b16 %v1021, %v1020
    %1038 = vmatprep.subr.bf16.mxu0 0
    %1039 = vmatpush1.bf16.msra.mxu0 %v1022
    %1040 = vmatprep.subr.bf16.mxu0 0
    %1041 = vmatpush1.bf16.msra.mxu0 %v1023
    %1042 = vmatprep.subr.bf16.mxu0 0
    %1043 = vmatpush1.bf16.msra.mxu0 %v1024
    %1044 = vmatprep.subr.bf16.mxu0 0
    %1045 = vmatpush1.bf16.msra.mxu0 %v1025
    %1046 = vmatprep.subr.bf16.mxu0 0
    %1047 = vmatpush1.bf16.msra.mxu0 %v1026
    %1048 = vmatprep.subr.bf16.mxu0 0
    %1049 = vmatpush1.bf16.msra.mxu0 %v1027
    %1050 = vmatprep.subr.bf16.mxu0 0
    %1051 = vmatpush1.bf16.msra.mxu0 %v1028
    %1052 = vmatprep.subr.bf16.mxu0 0
    %1053 = vmatpush1.bf16.msra.mxu0 %v1029
    %1054 = vmatprep.subr.bf16.mxu0 0
    %1055 = vmatpush1.bf16.msra.mxu0 0
    %1056 = vmatprep.subr.bf16.mxu0 0
    %1057 = vmatpush1.bf16.msra.mxu0 0
    %1058 = vmatprep.subr.bf16.mxu0 0
    %1059 = vmatpush1.bf16.msra.mxu0 0
    %1060 = vmatprep.subr.bf16.mxu0 0
    %1061 = vmatpush1.bf16.msra.mxu0 0
    %1062 = vmatprep.subr.bf16.mxu0 0
    %1063 = vmatpush1.bf16.msra.mxu0 0
    %1064 = vmatprep.subr.bf16.mxu0 0
    %1065 = vmatpush1.bf16.msra.mxu0 0
    %1066 = vmatprep.subr.bf16.mxu0 0
    %1067 = vmatpush1.bf16.msra.mxu0 0
    %1068 = vmatprep.subr.bf16.mxu0 0
    %1069 = vmatpush1.bf16.msra.mxu0 0
    %1070 = vmatprep.mubr.bf16.mxu0 0
    %1071 = vmatmul.mubr.bf16.gmra.mrb[0].mxu0 %v960
    %v1072 = vpop.f32.mrb[0].mxu0
    %v1073 = vadd.f32 %v988, %v1072
    %v1074 = vpop.f32.mrb[0].mxu0
    %v1075 = vpop.f32.mrb[0].mxu0
    %v1076 = vadd.f32 %v988, %v1075
    %v1077 = vpop.f32.mrb[0].mxu0
    %1078 = vmatprep.mubr.bf16.mxu0 0
    %1079 = vmatmul.mubr.bf16.gmra.mrb[0].mxu0 %v961
    %v1080 = vpop.f32.mrb[0].mxu0
    %v1081 = vadd.f32 %v988, %v1080
    %v1082 = vpop.f32.mrb[0].mxu0
    %v1083 = vpop.f32.mrb[0].mxu0
    %v1084 = vadd.f32 %v988, %v1083
    %v1085 = vpop.f32.mrb[0].mxu0
    %1086 = vmatprep.mubr.bf16.mxu0 0
    %1087 = vmatmul.mubr.bf16.gmra.mrb[0].mxu0 %v962
    %v1088 = vpop.f32.mrb[0].mxu0
    %v1089 = vadd.f32 %v988, %v1088
    %v1090 = vpop.f32.mrb[0].mxu0
    %v1091 = vpop.f32.mrb[0].mxu0
    %v1092 = vadd.f32 %v988, %v1091
    %v1093 = vpop.f32.mrb[0].mxu0
    %1094 = vmatprep.mubr.bf16.mxu0 0
    %1095 = vmatmul.mubr.bf16.gmra.mrb[0].mxu0 %v963
    %v1096 = vpop.f32.mrb[0].mxu0
    %v1097 = vadd.f32 %v988, %v1096
    %v1098 = vpop.f32.mrb[0].mxu0
    %v1099 = vpop.f32.mrb[0].mxu0
    %v1100 = vadd.f32 %v988, %v1099
    %v1101 = vpop.f32.mrb[0].mxu0
    %1102 = vmatprep.mubr.bf16.mxu0 0
    %1103 = vmatmul.mubr.bf16.gmra.mrb[0].mxu0 %v964
    %v1104 = vpop.f32.mrb[0].mxu0
    %v1105 = vadd.f32 %v988, %v1104
    %v1106 = vpop.f32.mrb[0].mxu0
    %v1107 = vpop.f32.mrb[0].mxu0
    %v1108 = vadd.f32 %v988, %v1107
    %v1109 = vpop.f32.mrb[0].mxu0
    %1110 = vmatprep.mubr.bf16.mxu0 0
    %1111 = vmatmul.mubr.bf16.gmra.mrb[0].mxu0 %v965
    %v1112 = vpop.f32.mrb[0].mxu0
    %v1113 = vadd.f32 %v988, %v1112
    %v1114 = vpop.f32.mrb[0].mxu0
    %v1115 = vpop.f32.mrb[0].mxu0
    %v1116 = vadd.f32 %v988, %v1115
    %v1117 = vpop.f32.mrb[0].mxu0
    %1118 = vmatprep.mubr.bf16.mxu0 0
    %1119 = vmatmul.mubr.bf16.gmra.mrb[0].mxu0 %v966
    %v1120 = vpop.f32.mrb[0].mxu0
    %v1121 = vadd.f32 %v988, %v1120
    %v1122 = vpop.f32.mrb[0].mxu0
    %v1123 = vpop.f32.mrb[0].mxu0
    %v1124 = vadd.f32 %v988, %v1123
    %v1125 = vpop.f32.mrb[0].mxu0
    %1126 = vmatprep.mubr.bf16.mxu0 0
    %1127 = vmatmul.mubr.bf16.gmra.mrb[0].mxu0 %v967
    %v1128 = vpop.f32.mrb[0].mxu0
    %v1129 = vadd.f32 %v988, %v1128
    %v1130 = vpop.f32.mrb[0].mxu0
    %v1131 = vpop.f32.mrb[0].mxu0
    %v1132 = vadd.f32 %v988, %v1131
    %v1133 = vpop.f32.mrb[0].mxu0
    %1134 = vdwg.mxu0
    %v1135 = vadd.f32 %v1073, 3.0
    %v1136 = vadd.f32 %v1076, 3.0
    %v1137 = vadd.f32 %v1081, 3.0
    %v1138 = vadd.f32 %v1084, 3.0
    %v1139 = vadd.f32 %v1089, 3.0
    %v1140 = vadd.f32 %v1092, 3.0
    %v1141 = vadd.f32 %v1097, 3.0
    %v1142 = vadd.f32 %v1100, 3.0
    %v1143 = vadd.f32 %v1105, 3.0
    %v1144 = vadd.f32 %v1108, 3.0
    %v1145 = vadd.f32 %v1113, 3.0
    %v1146 = vadd.f32 %v1116, 3.0
    %v1147 = vadd.f32 %v1121, 3.0
    %v1148 = vadd.f32 %v1124, 3.0
    %v1149 = vadd.f32 %v1129, 3.0
    %v1150 = vadd.f32 %v1132, 3.0
    %v1151 = vmax.f32 %v1135, 0.0
    %v1152 = vmax.f32 %v1136, 0.0
    %v1153 = vmax.f32 %v1137, 0.0
    %v1154 = vmax.f32 %v1138, 0.0
    %v1155 = vmax.f32 %v1139, 0.0
    %v1156 = vmax.f32 %v1140, 0.0
    %v1157 = vmax.f32 %v1141, 0.0
    %v1158 = vmax.f32 %v1142, 0.0
    %v1159 = vmax.f32 %v1143, 0.0
    %v1160 = vmax.f32 %v1144, 0.0
    %v1161 = vmax.f32 %v1145, 0.0
    %v1162 = vmax.f32 %v1146, 0.0
    %v1163 = vmax.f32 %v1147, 0.0
    %v1164 = vmax.f32 %v1148, 0.0
    %v1165 = vmax.f32 %v1149, 0.0
    %v1166 = vmax.f32 %v1150, 0.0
    %v1167 = vmin.f32 %v1151, 6.0
    %v1168 = vmin.f32 %v1152, 6.0
    %v1169 = vmin.f32 %v1153, 6.0
    %v1170 = vmin.f32 %v1154, 6.0
    %v1171 = vmin.f32 %v1155, 6.0
    %v1172 = vmin.f32 %v1156, 6.0
    %v1173 = vmin.f32 %v1157, 6.0
    %v1174 = vmin.f32 %v1158, 6.0
    %v1175 = vmin.f32 %v1159, 6.0
    %v1176 = vmin.f32 %v1160, 6.0
    %v1177 = vmin.f32 %v1161, 6.0
    %v1178 = vmin.f32 %v1162, 6.0
    %v1179 = vmin.f32 %v1163, 6.0
    %v1180 = vmin.f32 %v1164, 6.0
    %v1181 = vmin.f32 %v1165, 6.0
    %v1182 = vmin.f32 %v1166, 6.0
    %v1183 = vmul.f32 %v1073, %v1167
    %v1184 = vmul.f32 %v1076, %v1168
    %v1185 = vmul.f32 %v1081, %v1169
    %v1186 = vmul.f32 %v1084, %v1170
    %v1187 = vmul.f32 %v1089, %v1171
    %v1188 = vmul.f32 %v1092, %v1172
    %v1189 = vmul.f32 %v1097, %v1173
    %v1190 = vmul.f32 %v1100, %v1174
    %v1191 = vmul.f32 %v1105, %v1175
    %v1192 = vmul.f32 %v1108, %v1176
    %v1193 = vmul.f32 %v1113, %v1177
    %v1194 = vmul.f32 %v1116, %v1178
    %v1195 = vmul.f32 %v1121, %v1179
    %v1196 = vmul.f32 %v1124, %v1180
    %v1197 = vmul.f32 %v1129, %v1181
    %v1198 = vmul.f32 %v1132, %v1182
    %v1199 = vmul.f32 %v1183, 0.16666667
    %v1200 = vmul.f32 %v1184, 0.16666667
    %v1201 = vmul.f32 %v1185, 0.16666667
    %v1202 = vmul.f32 %v1186, 0.16666667
    %v1203 = vmul.f32 %v1187, 0.16666667
    %v1204 = vmul.f32 %v1188, 0.16666667
    %v1205 = vmul.f32 %v1189, 0.16666667
    %v1206 = vmul.f32 %v1190, 0.16666667
    %v1207 = vmul.f32 %v1191, 0.16666667
    %v1208 = vmul.f32 %v1192, 0.16666667
    %v1209 = vmul.f32 %v1193, 0.16666667
    %v1210 = vmul.f32 %v1194, 0.16666667
    %v1211 = vmul.f32 %v1195, 0.16666667
    %v1212 = vmul.f32 %v1196, 0.16666667
    %v1213 = vmul.f32 %v1197, 0.16666667
    %v1214 = vmul.f32 %v1198, 0.16666667
    %v1215 = vpack.c.bf16 %v1200, %v1199
    %v1216 = vpack.c.bf16 %v1202, %v1201
    %v1217 = vpack.c.bf16 %v1204, %v1203
    %v1218 = vpack.c.bf16 %v1206, %v1205
    %v1219 = vpack.c.bf16 %v1208, %v1207
    %v1220 = vpack.c.bf16 %v1210, %v1209
    %v1221 = vpack.c.bf16 %v1212, %v1211
    %v1222 = vpack.c.bf16 %v1214, %v1213
    %v1223 = vld [vmem:[#allocation10] sm:$0xf]
    %v1224 = vld [vmem:[#allocation10 + $0x4] sm:$0xf]
    %v1225 = vld [vmem:[#allocation10 + $0x8] sm:$0xf]
    %v1226 = vld [vmem:[#allocation10 + $0xc] sm:$0xf]
    %v1227 = vld [vmem:[#allocation10 + $0x10] sm:$0xf]
    %v1228 = vld [vmem:[#allocation10 + $0x14] sm:$0xf]
    %v1229 = vld [vmem:[#allocation10 + $0x18] sm:$0xf]
    %v1230 = vld [vmem:[#allocation10 + $0x1c] sm:$0xf]
    %v1231 = vld [vmem:[#allocation10 + $0x20] sm:$0xf]
    %v1232 = vld [vmem:[#allocation10 + $0x24] sm:$0xf]
    %v1233 = vld [vmem:[#allocation10 + $0x28] sm:$0xf]
    %v1234 = vld [vmem:[#allocation10 + $0x2c] sm:$0xf]
    %v1235 = vld [vmem:[#allocation10 + $0x30] sm:$0xf]
    %v1236 = vld [vmem:[#allocation10 + $0x34] sm:$0xf]
    %v1237 = vld [vmem:[#allocation10 + $0x38] sm:$0xf]
    %v1238 = vld [vmem:[#allocation10 + $0x3c] sm:$0xf]
    %v1240 = vlaneseq
    %v1241 = vshrl.u32 %v1240, 7
    %v1242 = vsub.s32 0, %v1241
    %v1243 = vrot.slane %v160, %v1242
    %v1261 = vunpack.c.l.b16 %v1223
    %v1262 = vunpack.c.l.b16 %v1224
    %v1263 = vunpack.c.l.b16 %v1225
    %v1264 = vunpack.c.l.b16 %v1226
    %v1265 = vunpack.c.l.b16 %v1227
    %v1266 = vunpack.c.l.b16 %v1228
    %v1267 = vunpack.c.l.b16 %v1229
    %v1268 = vunpack.c.l.b16 %v1230
    %v1269 = vunpack.c.l.b16 %v1231
    %v1270 = vunpack.c.l.b16 %v1232
    %v1271 = vunpack.c.l.b16 %v1233
    %v1272 = vunpack.c.l.b16 %v1234
    %v1273 = vunpack.c.l.b16 %v1235
    %v1274 = vunpack.c.l.b16 %v1236
    %v1275 = vunpack.c.l.b16 %v1237
    %v1276 = vunpack.c.l.b16 %v1238
    %v1277 = vpack.c.b16 %v1262, %v1261
    %v1278 = vpack.c.b16 %v1264, %v1263
    %v1279 = vpack.c.b16 %v1266, %v1265
    %v1280 = vpack.c.b16 %v1268, %v1267
    %v1281 = vpack.c.b16 %v1270, %v1269
    %v1282 = vpack.c.b16 %v1272, %v1271
    %v1283 = vpack.c.b16 %v1274, %v1273
    %v1284 = vpack.c.b16 %v1276, %v1275
    %1293 = vmatprep.subr.bf16.mxu0 0
    %1294 = vmatpush1.bf16.msra.mxu0 %v1277
    %1295 = vmatprep.subr.bf16.mxu0 0
    %1296 = vmatpush1.bf16.msra.mxu0 %v1278
    %1297 = vmatprep.subr.bf16.mxu0 0
    %1298 = vmatpush1.bf16.msra.mxu0 %v1279
    %1299 = vmatprep.subr.bf16.mxu0 0
    %1300 = vmatpush1.bf16.msra.mxu0 %v1280
    %1301 = vmatprep.subr.bf16.mxu0 0
    %1302 = vmatpush1.bf16.msra.mxu0 %v1281
    %1303 = vmatprep.subr.bf16.mxu0 0
    %1304 = vmatpush1.bf16.msra.mxu0 %v1282
    %1305 = vmatprep.subr.bf16.mxu0 0
    %1306 = vmatpush1.bf16.msra.mxu0 %v1283
    %1307 = vmatprep.subr.bf16.mxu0 0
    %1308 = vmatpush1.bf16.msra.mxu0 %v1284
    %1309 = vmatprep.subr.bf16.mxu0 0
    %1310 = vmatpush1.bf16.msra.mxu0 0
    %1311 = vmatprep.subr.bf16.mxu0 0
    %1312 = vmatpush1.bf16.msra.mxu0 0
    %1313 = vmatprep.subr.bf16.mxu0 0
    %1314 = vmatpush1.bf16.msra.mxu0 0
    %1315 = vmatprep.subr.bf16.mxu0 0
    %1316 = vmatpush1.bf16.msra.mxu0 0
    %1317 = vmatprep.subr.bf16.mxu0 0
    %1318 = vmatpush1.bf16.msra.mxu0 0
    %1319 = vmatprep.subr.bf16.mxu0 0
    %1320 = vmatpush1.bf16.msra.mxu0 0
    %1321 = vmatprep.subr.bf16.mxu0 0
    %1322 = vmatpush1.bf16.msra.mxu0 0
    %1323 = vmatprep.subr.bf16.mxu0 0
    %1324 = vmatpush1.bf16.msra.mxu0 0
    %1325 = vmatprep.mubr.bf16.mxu0 0
    %1326 = vmatmul.mubr.bf16.gmra.mrb[0].mxu0 %v1215
    %v1327 = vpop.f32.mrb[0].mxu0
    %v1328 = vadd.f32 %v1243, %v1327
    %v1329 = vpop.f32.mrb[0].mxu0
    %v1330 = vpop.f32.mrb[0].mxu0
    %v1331 = vadd.f32 %v1243, %v1330
    %v1332 = vpop.f32.mrb[0].mxu0
    %1333 = vmatprep.mubr.bf16.mxu0 0
    %1334 = vmatmul.mubr.bf16.gmra.mrb[0].mxu0 %v1216
    %v1335 = vpop.f32.mrb[0].mxu0
    %v1336 = vadd.f32 %v1243, %v1335
    %v1337 = vpop.f32.mrb[0].mxu0
    %v1338 = vpop.f32.mrb[0].mxu0
    %v1339 = vadd.f32 %v1243, %v1338
    %v1340 = vpop.f32.mrb[0].mxu0
    %1341 = vmatprep.mubr.bf16.mxu0 0
    %1342 = vmatmul.mubr.bf16.gmra.mrb[0].mxu0 %v1217
    %v1343 = vpop.f32.mrb[0].mxu0
    %v1344 = vadd.f32 %v1243, %v1343
    %v1345 = vpop.f32.mrb[0].mxu0
    %v1346 = vpop.f32.mrb[0].mxu0
    %v1347 = vadd.f32 %v1243, %v1346
    %v1348 = vpop.f32.mrb[0].mxu0
    %1349 = vmatprep.mubr.bf16.mxu0 0
    %1350 = vmatmul.mubr.bf16.gmra.mrb[0].mxu0 %v1218
    %v1351 = vpop.f32.mrb[0].mxu0
    %v1352 = vadd.f32 %v1243, %v1351
    %v1353 = vpop.f32.mrb[0].mxu0
    %v1354 = vpop.f32.mrb[0].mxu0
    %v1355 = vadd.f32 %v1243, %v1354
    %v1356 = vpop.f32.mrb[0].mxu0
    %1357 = vmatprep.mubr.bf16.mxu0 0
    %1358 = vmatmul.mubr.bf16.gmra.mrb[0].mxu0 %v1219
    %v1359 = vpop.f32.mrb[0].mxu0
    %v1360 = vadd.f32 %v1243, %v1359
    %v1361 = vpop.f32.mrb[0].mxu0
    %v1362 = vpop.f32.mrb[0].mxu0
    %v1363 = vadd.f32 %v1243, %v1362
    %v1364 = vpop.f32.mrb[0].mxu0
    %1365 = vmatprep.mubr.bf16.mxu0 0
    %1366 = vmatmul.mubr.bf16.gmra.mrb[0].mxu0 %v1220
    %v1367 = vpop.f32.mrb[0].mxu0
    %v1368 = vadd.f32 %v1243, %v1367
    %v1369 = vpop.f32.mrb[0].mxu0
    %v1370 = vpop.f32.mrb[0].mxu0
    %v1371 = vadd.f32 %v1243, %v1370
    %v1372 = vpop.f32.mrb[0].mxu0
    %1373 = vmatprep.mubr.bf16.mxu0 0
    %1374 = vmatmul.mubr.bf16.gmra.mrb[0].mxu0 %v1221
    %v1375 = vpop.f32.mrb[0].mxu0
    %v1376 = vadd.f32 %v1243, %v1375
    %v1377 = vpop.f32.mrb[0].mxu0
    %v1378 = vpop.f32.mrb[0].mxu0
    %v1379 = vadd.f32 %v1243, %v1378
    %v1380 = vpop.f32.mrb[0].mxu0
    %1381 = vmatprep.mubr.bf16.mxu0 0
    %1382 = vmatmul.mubr.bf16.gmra.mrb[0].mxu0 %v1222
    %v1383 = vpop.f32.mrb[0].mxu0
    %v1384 = vadd.f32 %v1243, %v1383
    %v1385 = vpop.f32.mrb[0].mxu0
    %v1386 = vpop.f32.mrb[0].mxu0
    %v1387 = vadd.f32 %v1243, %v1386
    %v1388 = vpop.f32.mrb[0].mxu0
    %1389 = vdwg.mxu0
    %1390 = vst [vmem:[#allocation11] sm:$0xff] %v1328
    %1391 = vst [vmem:[#allocation11 + $0x8] sm:$0xff] %v1331
    %1392 = vst [vmem:[#allocation11 + $0x10] sm:$0xff] %v1336
    %1393 = vst [vmem:[#allocation11 + $0x18] sm:$0xff] %v1339
    %1394 = vst [vmem:[#allocation11 + $0x20] sm:$0xff] %v1344
    %1395 = vst [vmem:[#allocation11 + $0x28] sm:$0xff] %v1347
    %1396 = vst [vmem:[#allocation11 + $0x30] sm:$0xff] %v1352
    %1397 = vst [vmem:[#allocation11 + $0x38] sm:$0xff] %v1355
    %1398 = vst [vmem:[#allocation11 + $0x40] sm:$0xff] %v1360
    %1399 = vst [vmem:[#allocation11 + $0x48] sm:$0xff] %v1363
    %1400 = vst [vmem:[#allocation11 + $0x50] sm:$0xff] %v1368
    %1401 = vst [vmem:[#allocation11 + $0x58] sm:$0xff] %v1371
    %1402 = vst [vmem:[#allocation11 + $0x60] sm:$0xff] %v1376
    %1403 = vst [vmem:[#allocation11 + $0x68] sm:$0xff] %v1379
    %1404 = vst [vmem:[#allocation11 + $0x70] sm:$0xff] %v1384
    %1405 = vst [vmem:[#allocation11 + $0x78] sm:$0xff] %v1387
    // Predicated region
    $region46: #{tpu_custom_call.1} parent=1 // pred_check
      _
    $region47: #{tpu_custom_call.1} parent=1 // pred_check_branch
      %1407 = sbr.rel (0) target = $region49
    $region48: #{tpu_custom_call.1} parent=1 // pred_region
      %s1409 = ssub.s32 2048, 32
      %1410 = vsyncadd [#allocation4], %s1409
      %s1411 = sshll.u32 [#allocation11], 4
      %s1412 = int_to_ptr.vmem [resolvable:$true] %s1411
      %1417 = dma.vmem_to_hbm [thread:$0]  %s1412, 32, %s6, [#allocation4], 32, 32, 2
    $region49: #{tpu_custom_call.1} parent=1 // pred_fallthru
      _
    // Predicated region
    $region50: #{tpu_custom_call.1} parent=1 // pred_check
      _
    $region51: #{tpu_custom_call.1} parent=1 // pred_check_branch
      %1419 = sbr.rel (0) target = $region53
    $region52: #{tpu_custom_call.1} parent=1 // pred_region
      %1420 = dma.done [#allocation4], 2048
    $region53: #{tpu_custom_call.1} parent=1 // pred_fallthru
      _
    %1421 = vsyncpa [#allocation3], 1
    %1422 = vsyncpa [#allocation6], 1
    %1423 = vsyncpa [#allocation9], 1
    %1424 = vsyncpa [#allocation4], 1

</llo_original>
